<compile_context>
chip_gen: v5e
topology: v5e:2x2
jax: 0.10.0
libtpu: 0.0.40
codegen_flags: <defaults>
</compile_context>

<pallas_src>
import jax
import jax.numpy as jnp
from jax.experimental import pallas as pl
from jax.experimental.pallas import tpu as pltpu


def _densediff_pool_kernel(x_ref, s_ref, wt_ref, b_ref, o_ref):
    # x_ref : (B, TN, K)  node-feature tile (all batches, TN rows of N)
    # s_ref : (B, K,  C)  raw assignment logits (grid-invariant, stays resident)
    # wt_ref: (C, C)      W^T of the nn.Linear (pre-transposed in the wrapper)
    # b_ref : (1, 1, C)   bias
    # o_ref : (B, TN, C)  output tile
    B, TN, K = x_ref.shape
    C = s_ref.shape[-1]

    # softmax(s, axis=-1), numerically stable; math in f32 (no-op for f32 inputs,
    # deliberate upcast for bf16 since v5e has no bf16 VPU/EUP).
    s32 = s_ref[...].astype(jnp.float32)
    e = jnp.exp(s32 - jnp.max(s32, axis=-1, keepdims=True))
    # Reciprocal goes to the EUP slot instead of a VPU divide sequence.
    p = e * pl.reciprocal(jnp.sum(e, axis=-1, keepdims=True), approx=False)

    x = x_ref[...]
    wt = wt_ref[...]
    p = p.astype(wt.dtype)                      # bf16 inputs stay bf16 for the MXU
    wt_b = jnp.broadcast_to(wt, (B, C, C))      # tiny (B*C*C); once per grid step

    if TN >= K:
        # Reassociate: (x @ p) @ W^T == x @ (p @ W^T).  For realistic diffpool
        # sizes (num_nodes >> K, C) the Linear becomes the small (K,C)x(C,C)
        # matmul instead of (TN,C)x(C,C), and the (TN,C) f32 intermediate goes away.
        m = jnp.einsum("bkc,bcd->bkd", p, wt_b,
                       preferred_element_type=jnp.float32)
        out = jnp.einsum("bnk,bkc->bnc", x, m.astype(x.dtype),
                         preferred_element_type=jnp.float32)
    else:
        # Short tile (TN < K): classic order does less MXU work.
        assign = jnp.einsum("bnk,bkc->bnc", x, p.astype(x.dtype),
                            preferred_element_type=jnp.float32)
        out = jnp.einsum("bnc,bcd->bnd", assign.astype(wt.dtype), wt_b,
                         preferred_element_type=jnp.float32)

    o_ref[...] = (out + b_ref[...].astype(jnp.float32)).astype(o_ref.dtype)


def densediff_pool(x, s, w, b, *, block_n=None):
    """x: (B, N, K) or (N, K), s: (B, K, C) or (K, C), w: (C, C) PyTorch Linear
    weight, b: (C,).  Returns (B, N, C) — batched, exactly like the PyTorch
    module (which unsqueezes 2-D inputs and never squeezes back)."""
    # TODO(synk): optional `mask` argument of the PyTorch module is not
    # implemented (the default call path uses mask=None).
    if x.ndim == 2:
        x = x[None]
    if s.ndim == 2:
        s = s[None]
    B, N, K = x.shape
    Bs, K2, C = s.shape
    assert K == K2 and Bs == B, "x/s shapes incompatible with matmul"

    # One-time layout plumbing in HBM so the kernel never transposes W.
    w_t = jnp.transpose(w)                 # assign @ w.T == assign @ w_t
    b3d = b.reshape(1, 1, C)

    # Single grid axis over tiles of N, whole batch per step.
    #  - Keep >=2 parallel steps when N allows, so v7x's 2 TensorCores split
    #    the work; v5e/v6e only pay one extra ~0.35us step.
    #  - block_n must satisfy the sublane rule (multiple of 8 or == N).
    # For production sizes (large N/K), shrink block_n (e.g. 256-1024 rows) and
    # set pltpu.CompilerParams(vmem_limit_bytes=...) for v7x's 64 MiB VMEM.
    if block_n is None:
        block_n = N // 2 if (N % 16 == 0) else N
    assert N % block_n == 0 and (block_n % 8 == 0 or block_n == N)
    grid = (N // block_n,)

    return pl.pallas_call(
        _densediff_pool_kernel,
        out_shape=jax.ShapeDtypeStruct((B, N, C), x.dtype),
        grid_spec=pltpu.PrefetchScalarGridSpec(
            num_scalar_prefetch=0,
            grid=grid,
            in_specs=[
                pl.BlockSpec((B, block_n, K), lambda i: (0, i, 0)),  # x tile
                pl.BlockSpec((B, K, C), lambda i: (0, 0, 0)),        # s (resident)
                pl.BlockSpec((C, C), lambda i: (0, 0)),              # W^T (resident)
                pl.BlockSpec((1, 1, C), lambda i: (0, 0, 0)),        # bias (resident)
            ],
            out_specs=pl.BlockSpec((B, block_n, C), lambda i: (0, i, 0)),
        ),
        compiler_params=pltpu.CompilerParams(
            dimension_semantics=("parallel",),
        ),
    )(x, s, w_t, b3d)


def _reference(x, s, w, b):
    if x.ndim == 2:
        x = x[None]
    if s.ndim == 2:
        s = s[None]
    p = jax.nn.softmax(s, axis=-1)
    assign = jnp.einsum("bnk,bkc->bnc", x, p)
    return assign @ w.T + b


if __name__ == "__main__":
    def run_case(key, B, N, K, C):
        kx, ks, kw, kb = jax.random.split(key, 4)
        x = jax.random.normal(kx, (B, N, K), dtype=jnp.float32)
        s = jax.random.normal(ks, (B, K, C), dtype=jnp.float32)
        # Deterministic nn.Linear(C, C)-style init: U(-1/sqrt(C), 1/sqrt(C))
        bound = 1.0 / (C ** 0.5)
        w = jax.random.uniform(kw, (C, C), minval=-bound, maxval=bound,
                               dtype=jnp.float32)
        b = jax.random.uniform(kb, (C,), minval=-bound, maxval=bound,
                               dtype=jnp.float32)
        out = jax.block_until_ready(densediff_pool(x, s, w, b))
        ref = _reference(x, s, w, b)
        assert out.shape == (B, N, C)
        assert jnp.allclose(out, ref, atol=1e-5, rtol=1e-5), "mismatch vs reference"

    k1, k2 = jax.random.split(jax.random.PRNGKey(0))
    run_case(k1, B=2, N=16, K=32, C=8)   # tile shorter than K -> classic order path
    run_case(k2, B=2, N=64, K=16, C=8)   # tile taller than K -> reassociated path

    print("KERNEL_OK")
</pallas_src>

<mosaic_0001>
module attributes {stable_mosaic.version = 11 : i64} {
  func.func @_densediff_pool_kernel(%arg0: i32, %arg1: memref<2x8x32xf32, #tpu.memory_space<vmem>>, %arg2: memref<2x32x8xf32, #tpu.memory_space<vmem>>, %arg3: memref<8x8xf32, #tpu.memory_space<vmem>>, %arg4: memref<1x1x8xf32, #tpu.memory_space<vmem>>, %arg5: memref<2x8x8xf32, #tpu.memory_space<vmem>>) attributes {dimension_semantics = [#tpu.dimension_semantics<parallel>], iteration_bounds = array<i64: 2>, scalar_prefetch = 0 : i64, scratch_operands = 0 : i64, tpu.core_type = #tpu.core_type<tc>, window_params = [{transform_indices = @transform_0, window_bounds = array<i64: 2, 8, 32>}, {pipeline_mode = #tpu.pipeline_mode<synchronous>, transform_indices = @transform_1, window_bounds = array<i64: 2, 32, 8>}, {pipeline_mode = #tpu.pipeline_mode<synchronous>, transform_indices = @transform_2, window_bounds = array<i64: 8, 8>}, {pipeline_mode = #tpu.pipeline_mode<synchronous>, transform_indices = @transform_3, window_bounds = array<i64: 1, 1, 8>}, {transform_indices = @transform_4, window_bounds = array<i64: 2, 8, 8>}]} {
    %c0 = arith.constant 0 : index
    %c0_0 = arith.constant 0 : index
    %c0_1 = arith.constant 0 : index
    %0 = vector.load %arg2[%c0, %c0_0, %c0_1] : memref<2x32x8xf32, #tpu.memory_space<vmem>>, vector<2x32x8xf32>
    %cst = arith.constant dense<0xFF800000> : vector<2x32xf32>
    %1 = vector.multi_reduction <maximumf>, %0, %cst [2] : vector<2x32x8xf32> to vector<2x32xf32>
    %2 = vector.shape_cast %1 : vector<2x32xf32> to vector<2x32x1xf32>
    %3 = vector.broadcast %2 : vector<2x32x1xf32> to vector<2x32x8xf32>
    %4 = arith.subf %0, %3 : vector<2x32x8xf32>
    %5 = math.exp %4 : vector<2x32x8xf32>
    %cst_2 = arith.constant dense<0.000000e+00> : vector<2x32xf32>
    %6 = vector.multi_reduction <add>, %5, %cst_2 [2] : vector<2x32x8xf32> to vector<2x32xf32>
    %7 = vector.shape_cast %6 : vector<2x32xf32> to vector<2x32x1xf32>
    %8 = tpu.reciprocal %7 : vector<2x32x1xf32> -> vector<2x32x1xf32>
    %9 = vector.broadcast %8 : vector<2x32x1xf32> to vector<2x32x8xf32>
    %10 = arith.mulf %5, %9 : vector<2x32x8xf32>
    %c0_3 = arith.constant 0 : index
    %c0_4 = arith.constant 0 : index
    %c0_5 = arith.constant 0 : index
    %11 = vector.load %arg1[%c0_3, %c0_4, %c0_5] : memref<2x8x32xf32, #tpu.memory_space<vmem>>, vector<2x8x32xf32>
    %c0_6 = arith.constant 0 : index
    %c0_7 = arith.constant 0 : index
    %12 = vector.load %arg3[%c0_6, %c0_7] : memref<8x8xf32, #tpu.memory_space<vmem>>, vector<8x8xf32>
    %13 = vector.shape_cast %12 : vector<8x8xf32> to vector<1x8x8xf32>
    %14 = vector.broadcast %13 : vector<1x8x8xf32> to vector<2x8x8xf32>
    "tpu.trace_start"() <{level = 10 : i32, message = "bnk,bkc->bnc"}> : () -> ()
    %cst_8 = arith.constant dense<0.000000e+00> : vector<2x8x8xf32>
    %15 = tpu.matmul %11, %10, %cst_8 {dimension_numbers = #tpu.dot_dimension_numbers<[2], [1], [1], [2], [0, 0, 0, 1, 1, 2], [0], [0]>} : vector<2x8x32xf32>, vector<2x32x8xf32>, vector<2x8x8xf32> -> vector<2x8x8xf32>
    "tpu.trace_stop"() : () -> ()
    "tpu.trace_start"() <{level = 10 : i32, message = "bnc,bcd->bnd"}> : () -> ()
    %cst_9 = arith.constant dense<0.000000e+00> : vector<2x8x8xf32>
    %16 = tpu.matmul %15, %14, %cst_9 {dimension_numbers = #tpu.dot_dimension_numbers<[2], [1], [1], [2], [0, 0, 0, 1, 1, 2], [0], [0]>} : vector<2x8x8xf32>, vector<2x8x8xf32>, vector<2x8x8xf32> -> vector<2x8x8xf32>
    "tpu.trace_stop"() : () -> ()
    %c0_10 = arith.constant 0 : index
    %c0_11 = arith.constant 0 : index
    %c0_12 = arith.constant 0 : index
    %17 = vector.load %arg4[%c0_10, %c0_11, %c0_12] : memref<1x1x8xf32, #tpu.memory_space<vmem>>, vector<1x1x8xf32>
    %18 = vector.broadcast %17 : vector<1x1x8xf32> to vector<2x8x8xf32>
    %19 = arith.addf %16, %18 : vector<2x8x8xf32>
    %c0_13 = arith.constant 0 : index
    %c0_14 = arith.constant 0 : index
    %c0_15 = arith.constant 0 : index
    %20 = vector.load %arg5[%c0_13, %c0_14, %c0_15] : memref<2x8x8xf32, #tpu.memory_space<vmem>>, vector<2x8x8xf32>
    tpu.vector_store %arg5[%c0_13, %c0_14, %c0_15], %19 {strides = array<i32>} : memref<2x8x8xf32, #tpu.memory_space<vmem>>, vector<2x8x8xf32>,
    return
  }
  func.func @transform_0(%arg0: i32) -> (i32, i32, i32) {
    %c0_i32 = arith.constant 0 : i32
    %c0_i32_0 = arith.constant 0 : i32
    %c0_i32_1 = arith.constant 0 : i32
    return %c0_i32, %arg0, %c0_i32_0 : i32, i32, i32
  }
  func.func @transform_1(%arg0: i32) -> (i32, i32, i32) {
    %c0_i32 = arith.constant 0 : i32
    %c0_i32_0 = arith.constant 0 : i32
    %c0_i32_1 = arith.constant 0 : i32
    %c0_i32_2 = arith.constant 0 : i32
    return %c0_i32, %c0_i32_0, %c0_i32_1 : i32, i32, i32
  }
  func.func @transform_2(%arg0: i32) -> (i32, i32) {
    %c0_i32 = arith.constant 0 : i32
    %c0_i32_0 = arith.constant 0 : i32
    %c0_i32_1 = arith.constant 0 : i32
    return %c0_i32, %c0_i32_0 : i32, i32
  }
  func.func @transform_3(%arg0: i32) -> (i32, i32, i32) {
    %c0_i32 = arith.constant 0 : i32
    %c0_i32_0 = arith.constant 0 : i32
    %c0_i32_1 = arith.constant 0 : i32
    %c0_i32_2 = arith.constant 0 : i32
    return %c0_i32, %c0_i32_0, %c0_i32_1 : i32, i32, i32
  }
  func.func @transform_4(%arg0: i32) -> (i32, i32, i32) {
    %c0_i32 = arith.constant 0 : i32
    %c0_i32_0 = arith.constant 0 : i32
    %c0_i32_1 = arith.constant 0 : i32
    return %c0_i32, %arg0, %c0_i32_0 : i32, i32, i32
  }
}

</mosaic_0001>

<llo_original>
// kernel: tpu_custom_call.1
$region0: #{tpu_custom_call.1}
  #allocation0 [shape = 'u32[]', space=smem, size = 0x4, offset = 0x4, fixed_abs, tag = 'smem constant byte address 0x4 - core index']
  #allocation1 [shape = 'u32[72,128]{1,0:T(1,128)}', space=vmem, size = 0x9000, scoped, tag = 'internal scratch']
  %s0 = inlined_call_operand.vmem [shape: f32[2,16,32], index: 0, kind: input, shape index: {}]
  %s1 = inlined_call_operand.vmem [shape: f32[2,32,8], index: 1, kind: input, shape index: {}]
  %s2 = inlined_call_operand.vmem [shape: f32[8,8], index: 2, kind: input, shape index: {}]
  %s3 = inlined_call_operand.vmem [shape: f32[1,1,8], index: 3, kind: input, shape index: {}]
  %s4 = inlined_call_operand.vmem [shape: f32[2,16,8], index: 4, kind: output, shape index: {}]
  %s5 = sld [smem:[#allocation0]]
  $region121: #{tpu_custom_call.1} parent=0
    _
  %s7 = ssub.s32 1, %s5
  %s8 = scalar_select 0, %s7, %s5
  $region1: #{tpu_custom_call.1} parent=0
    #allocation2 [shape = 'u8[16384]{0}', space=vmem, size = 0x4000, scoped, tag = 'input window, operand 0']
    #allocation3 [shape = 'u8[16384]{0}', space=vmem, size = 0x4000, scoped, tag = 'output window, operand 0']
    loop: start=0, step=1, limit=4
    $region2: #{tpu_custom_call.1} parent=1 // loop_pre_header
      _
    $region3: #{tpu_custom_call.1} parent=1 // loop_header
      %s10 = sphi 0, %s14
      %p11 = scmp.ge.s32.totalorder %s10, 4
      %s20 = sphi 0, %s22
      %s23 = sphi 0, %s20
      %s24 = sphi 0, %s23
      %s40 = sphi 0, %s24
      %s44 = sphi 0, %s44
      %s46 = sphi 0, %s44
      %s47 = sphi 0, %s46
      %s61 = sphi 0, %s47
      %s65 = sphi 0, %s65
      %s67 = sphi 0, %s65
      %s68 = sphi 0, %s67
      %s82 = sphi 0, %s68
      %s86 = sphi 0, %s86
      %s88 = sphi 0, %s86
      %s89 = sphi 0, %s88
      %s103 = sphi 0, %s89
      %s109 = sphi 0, %s111
      %s112 = sphi 0, %s109
      %s113 = sphi 0, %s112
      %s129 = sphi 0, %s113
    $region4: #{tpu_custom_call.1} parent=1 // loop_header_branch
      %13 = sbr.rel (%p11) target = $region8
    $region5: #{tpu_custom_call.1} parent=1 // loop_body
      %s15 = ssub.s32 %s10, 1
      %s16 = ssub.s32 %s10, 2
      %s17 = sadd.s32 %s10, 1
      %s18 = ssub.s32 %s10, %s17
      %p19 = scmp.eq.s32.totalorder %s18, 0
      %s21 = sadd.s32 %s20, 1
      %s22 = scalar_select %p19, %s20, %s21
      %p25 = pneg %p19
      %p26 = scmp.eq.s32.totalorder %s10, 1
      %p27 = por %p25, %p26
      %p28 = scmp.ne.s32.totalorder %s20, %s23
      %p29 = scmp.eq.s32.totalorder %s10, 0
      %p30 = por %p28, %p29
      %p31 = scmp.ne.s32.totalorder %s20, %s23
      %p32 = scmp.eq.s32.totalorder %s15, 1
      %p33 = por %p31, %p32
      %p34 = scmp.ne.s32.totalorder %s23, %s24
      %p35 = scmp.eq.s32.totalorder %s15, 0
      %p36 = por %p34, %p35
      %p37 = scmp.ne.s32.totalorder %s23, %s24
      %p38 = scmp.eq.s32.totalorder %s16, 1
      %p39 = por %p37, %p38
      %p41 = scmp.ne.s32.totalorder %s24, %s40
      %p42 = scmp.eq.s32.totalorder %s16, 0
      %p43 = por %p41, %p42
      %s45 = sadd.s32 %s44, 1
      %p48 = scmp.eq.s32.totalorder %s10, 1
      %p49 = scmp.ne.s32.totalorder %s44, %s46
      %p50 = scmp.eq.s32.totalorder %s10, 0
      %p51 = por %p49, %p50
      %p52 = scmp.ne.s32.totalorder %s44, %s46
      %p53 = scmp.eq.s32.totalorder %s15, 1
      %p54 = por %p52, %p53
      %p55 = scmp.ne.s32.totalorder %s46, %s47
      %p56 = scmp.eq.s32.totalorder %s15, 0
      %p57 = por %p55, %p56
      %p58 = scmp.ne.s32.totalorder %s46, %s47
      %p59 = scmp.eq.s32.totalorder %s16, 1
      %p60 = por %p58, %p59
      %p62 = scmp.ne.s32.totalorder %s47, %s61
      %p63 = scmp.eq.s32.totalorder %s16, 0
      %p64 = por %p62, %p63
      %s66 = sadd.s32 %s65, 1
      %p69 = scmp.eq.s32.totalorder %s10, 1
      %p70 = scmp.ne.s32.totalorder %s65, %s67
      %p71 = scmp.eq.s32.totalorder %s10, 0
      %p72 = por %p70, %p71
      %p73 = scmp.ne.s32.totalorder %s65, %s67
      %p74 = scmp.eq.s32.totalorder %s15, 1
      %p75 = por %p73, %p74
      %p76 = scmp.ne.s32.totalorder %s67, %s68
      %p77 = scmp.eq.s32.totalorder %s15, 0
      %p78 = por %p76, %p77
      %p79 = scmp.ne.s32.totalorder %s67, %s68
      %p80 = scmp.eq.s32.totalorder %s16, 1
      %p81 = por %p79, %p80
      %p83 = scmp.ne.s32.totalorder %s68, %s82
      %p84 = scmp.eq.s32.totalorder %s16, 0
      %p85 = por %p83, %p84
      %s87 = sadd.s32 %s86, 1
      %p90 = scmp.eq.s32.totalorder %s10, 1
      %p91 = scmp.ne.s32.totalorder %s86, %s88
      %p92 = scmp.eq.s32.totalorder %s10, 0
      %p93 = por %p91, %p92
      %p94 = scmp.ne.s32.totalorder %s86, %s88
      %p95 = scmp.eq.s32.totalorder %s15, 1
      %p96 = por %p94, %p95
      %p97 = scmp.ne.s32.totalorder %s88, %s89
      %p98 = scmp.eq.s32.totalorder %s15, 0
      %p99 = por %p97, %p98
      %p100 = scmp.ne.s32.totalorder %s88, %s89
      %p101 = scmp.eq.s32.totalorder %s16, 1
      %p102 = por %p100, %p101
      %p104 = scmp.ne.s32.totalorder %s89, %s103
      %p105 = scmp.eq.s32.totalorder %s16, 0
      %p106 = por %p104, %p105
      %s107 = ssub.s32 %s10, %s17
      %p108 = scmp.eq.s32.totalorder %s107, 0
      %s110 = sadd.s32 %s109, 1
      %s111 = scalar_select %p108, %s109, %s110
      %p114 = pneg %p108
      %p115 = scmp.eq.s32.totalorder %s10, 1
      %p116 = por %p114, %p115
      %p117 = scmp.ne.s32.totalorder %s109, %s112
      %p118 = scmp.eq.s32.totalorder %s10, 0
      %p119 = por %p117, %p118
      %p120 = scmp.ne.s32.totalorder %s109, %s112
      %p121 = scmp.eq.s32.totalorder %s15, 1
      %p122 = por %p120, %p121
      %p123 = scmp.ne.s32.totalorder %s112, %s113
      %p124 = scmp.eq.s32.totalorder %s15, 0
      %p125 = por %p123, %p124
      %p126 = scmp.ne.s32.totalorder %s112, %s113
      %p127 = scmp.eq.s32.totalorder %s16, 1
      %p128 = por %p126, %p127
      %p130 = scmp.ne.s32.totalorder %s113, %s129
      %p131 = scmp.eq.s32.totalorder %s16, 0
      %p132 = por %p130, %p131
      %p133 = scmp.le.s32.totalorder 1, %s10
      %p134 = scmp.lt.s32.totalorder %s10, 3
      %p135 = pnand %p133, %p134
      %p136 = pneg %p135
      // Predicated region
      $region9: #{tpu_custom_call.1} parent=5 // pred_check
        _
      $region10: #{tpu_custom_call.1} parent=5 // pred_check_branch
        %138 = sbr.rel (%p135) target = $region12
      $region11: #{tpu_custom_call.1} parent=5 // pred_region
        %s139 = ssub.s32 %s10, 1
        // Predicated region
        $region13: #{tpu_custom_call.1} parent=11 // pred_check
          %p140 = pneg %p57
        $region14: #{tpu_custom_call.1} parent=11 // pred_check_branch
          %142 = sbr.rel (%p140) target = $region16
        $region15: #{tpu_custom_call.1} parent=11 // pred_region
          _
        $region16: #{tpu_custom_call.1} parent=11 // pred_fallthru
          _
        // Predicated region
        $region17: #{tpu_custom_call.1} parent=11 // pred_check
          %p143 = pneg %p78
        $region18: #{tpu_custom_call.1} parent=11 // pred_check_branch
          %145 = sbr.rel (%p143) target = $region20
        $region19: #{tpu_custom_call.1} parent=11 // pred_region
          _
        $region20: #{tpu_custom_call.1} parent=11 // pred_fallthru
          _
        // Predicated region
        $region21: #{tpu_custom_call.1} parent=11 // pred_check
          %p146 = pneg %p99
        $region22: #{tpu_custom_call.1} parent=11 // pred_check_branch
          %148 = sbr.rel (%p146) target = $region24
        $region23: #{tpu_custom_call.1} parent=11 // pred_region
          _
        $region24: #{tpu_custom_call.1} parent=11 // pred_fallthru
          _
      $region12: #{tpu_custom_call.1} parent=5 // pred_fallthru
        _
      %p149 = scmp.lt.s32.totalorder %s10, 2
      // Predicated region
      $region25: #{tpu_custom_call.1} parent=5 // pred_check
        %p150 = pneg %p149
      $region26: #{tpu_custom_call.1} parent=5 // pred_check_branch
        %152 = sbr.rel (%p150) target = $region28
      $region27: #{tpu_custom_call.1} parent=5 // pred_region
        // Predicated region
        $region29: #{tpu_custom_call.1} parent=27 // pred_check
          %p153 = pneg %p30
        $region30: #{tpu_custom_call.1} parent=27 // pred_check_branch
          %155 = sbr.rel (%p153) target = $region32
        $region31: #{tpu_custom_call.1} parent=27 // pred_region
          %s156 = sand.u32 %s20, 1
          %s157 = sand.u32 %s20, 1
          %s158 = smul.addr %s157, 16
          %s159 = scalar_lea.vmem [#allocation2], %s158
          %s160 = smul.addr %s10, 8
          %s161 = scalar_lea.vmem %s0, %s160
          // Predicated region
          $region33: #{tpu_custom_call.1} parent=31 // pred_check
            _
          $region34: #{tpu_custom_call.1} parent=31 // pred_check_branch
            %163 = sbr.rel (0) target = $region36
          $region35: #{tpu_custom_call.1} parent=31 // pred_region
            // Predicated region
            $region37: #{tpu_custom_call.1} parent=35 // pred_check
              _
            $region38: #{tpu_custom_call.1} parent=35 // pred_check_branch
              %165 = sbr.rel (0) target = $region40
            $region39: #{tpu_custom_call.1} parent=35 // pred_region
              // Predicated region
              $region52: #{tpu_custom_call.1} parent=39 // pred_check
                _
              $region53: #{tpu_custom_call.1} parent=39 // pred_check_branch
                %183 = sbr.rel (0) target = $region55
              $region54: #{tpu_custom_call.1} parent=39 // pred_region
                loop: start=0, step=1, limit=1
                $region56: #{tpu_custom_call.1} parent=54 // loop_pre_header
                  _
                $region57: #{tpu_custom_call.1} parent=54 // loop_header
                  %s185 = sphi 0, %s189
                  %p186 = scmp.ge.s32.totalorder %s185, 1
                  %s190 = sphi %s161, %s161
                  %s191 = sphi %s159, %s159
                $region58: #{tpu_custom_call.1} parent=54 // loop_header_branch
                  %188 = sbr.rel (%p186) target = $region62
                $region59: #{tpu_custom_call.1} parent=54 // loop_body
                  %v192 = vld [vmem:[%s190] sm:$0xff]
                  %193 = vst [vmem:[%s191] sm:$0xff] %v192
                  %v194 = vld [vmem:[%s190 + $0x10] sm:$0xff]
                  %195 = vst [vmem:[%s191 + $0x8] sm:$0xff] %v194
                $region60: #{tpu_custom_call.1} parent=54 // loop_footer
                  %s189 = sadd.s32 1, %s185
                $region61: #{tpu_custom_call.1} parent=54 // loop_footer_branch
                  %184 = sbr.rel target = $region57
                $region62: #{tpu_custom_call.1} parent=54 // loop_exit
                  _
              $region55: #{tpu_custom_call.1} parent=39 // pred_fallthru
                _
              // Predicated region
              $region63: #{tpu_custom_call.1} parent=39 // pred_check
                _
              $region64: #{tpu_custom_call.1} parent=39 // pred_check_branch
                %197 = sbr.rel target = $region66
              $region65: #{tpu_custom_call.1} parent=39 // pred_region
                _
              $region66: #{tpu_custom_call.1} parent=39 // pred_fallthru
                _
            $region40: #{tpu_custom_call.1} parent=35 // pred_fallthru
              _
            // Predicated region
            $region41: #{tpu_custom_call.1} parent=35 // pred_check
              _
            $region42: #{tpu_custom_call.1} parent=35 // pred_check_branch
              %167 = sbr.rel target = $region44
            $region43: #{tpu_custom_call.1} parent=35 // pred_region
              %s169 = ssub.s32 256, 1
              loop: start=0, step=1, limit=1
              $region45: #{tpu_custom_call.1} parent=43 // loop_pre_header
                _
              $region46: #{tpu_custom_call.1} parent=43 // loop_header
                %s171 = sphi 0, %s175
                %p172 = scmp.ge.s32.totalorder %s171, 1
                %s176 = sphi %s161, %s161
                %s177 = sphi %s159, %s159
              $region47: #{tpu_custom_call.1} parent=43 // loop_header_branch
                %174 = sbr.rel (%p172) target = $region51
              $region48: #{tpu_custom_call.1} parent=43 // loop_body
                %v178 = vld [vmem:[%s176] sm:%s169]
                %179 = vst [vmem:[%s177] sm:%s169] %v178
                %v180 = vld [vmem:[%s176 + $0x10] sm:%s169]
                %181 = vst [vmem:[%s177 + $0x8] sm:%s169] %v180
              $region49: #{tpu_custom_call.1} parent=43 // loop_footer
                %s175 = sadd.s32 1, %s171
              $region50: #{tpu_custom_call.1} parent=43 // loop_footer_branch
                %170 = sbr.rel target = $region46
              $region51: #{tpu_custom_call.1} parent=43 // loop_exit
                _
            $region44: #{tpu_custom_call.1} parent=35 // pred_fallthru
              _
          $region36: #{tpu_custom_call.1} parent=31 // pred_fallthru
            _
          %198 = vnop
        $region32: #{tpu_custom_call.1} parent=27 // pred_fallthru
          _
      $region28: #{tpu_custom_call.1} parent=5 // pred_fallthru
        _
      %p199 = scmp.le.s32.totalorder 1, %s10
      %p200 = scmp.lt.s32.totalorder %s10, 3
      %p201 = pnand %p199, %p200
      %p202 = pneg %p201
      // Predicated region
      $region67: #{tpu_custom_call.1} parent=5 // pred_check
        _
      $region68: #{tpu_custom_call.1} parent=5 // pred_check_branch
        %204 = sbr.rel (%p201) target = $region70
      $region69: #{tpu_custom_call.1} parent=5 // pred_region
        %s205 = ssub.s32 %s10, 1
        %s206 = sand.u32 %s23, 1
        %s207 = sand.u32 %s23, 1
        %s208 = smul.addr %s207, 16
        %s209 = scalar_lea.vmem [#allocation2], %s208
        // Predicated region
        $region71: #{tpu_custom_call.1} parent=69 // pred_check
          %p210 = pneg %p36
        $region72: #{tpu_custom_call.1} parent=69 // pred_check_branch
          %212 = sbr.rel (%p210) target = $region74
        $region73: #{tpu_custom_call.1} parent=69 // pred_region
          _
        $region74: #{tpu_custom_call.1} parent=69 // pred_fallthru
          _
        %s213 = sand.u32 %s23, 1
        %s214 = sand.u32 %s23, 1
        %s215 = smul.addr %s214, 16
        %s216 = scalar_lea.vmem [#allocation2], %s215
        %p217 = pneg %p36
        %p218 = pneg %p33
        %p219 = pneg %p57
        %p220 = pneg %p54
        %p221 = pneg %p78
        %p222 = pneg %p75
        %p223 = pneg %p99
        %p224 = pneg %p96
        %p225 = pneg %p125
        %p226 = pneg %p122
        %s227 = sand.u32 %s112, 1
        %s228 = sand.u32 %s112, 1
        %s229 = smul.addr %s228, 16
        %s230 = scalar_lea.vmem [#allocation3], %s229
        %v231 = vld [vmem:[%s1] sm:$0xff]
        %v232 = vld [vmem:[%s1 + $0x8] sm:$0xff]
        %v233 = vld [vmem:[%s1 + $0x10] sm:$0xff]
        %v234 = vld [vmem:[%s1 + $0x18] sm:$0xff]
        %v235 = vld [vmem:[%s1 + $0x20] sm:$0xff]
        %v236 = vld [vmem:[%s1 + $0x28] sm:$0xff]
        %v237 = vld [vmem:[%s1 + $0x30] sm:$0xff]
        %v238 = vld [vmem:[%s1 + $0x38] sm:$0xff]
        %vm239 = vcmask 64512
        %v240 = vsel %vm239, %v231, -inf
        %241 = vmax.xlane.f32.xlu0 %v240
        %v242 = vpop.xlane.xlu0 %241
        %v243 = vsel %vm239, %v232, -inf
        %244 = vmax.xlane.f32.xlu0 %v243
        %v245 = vpop.xlane.xlu0 %244
        %v246 = vsel %vm239, %v233, -inf
        %247 = vmax.xlane.f32.xlu0 %v246
        %v248 = vpop.xlane.xlu0 %247
        %v249 = vsel %vm239, %v234, -inf
        %250 = vmax.xlane.f32.xlu0 %v249
        %v251 = vpop.xlane.xlu0 %250
        %v252 = vsel %vm239, %v235, -inf
        %253 = vmax.xlane.f32.xlu0 %v252
        %v254 = vpop.xlane.xlu0 %253
        %v255 = vsel %vm239, %v236, -inf
        %256 = vmax.xlane.f32.xlu0 %v255
        %v257 = vpop.xlane.xlu0 %256
        %v258 = vsel %vm239, %v237, -inf
        %259 = vmax.xlane.f32.xlu0 %v258
        %v260 = vpop.xlane.xlu0 %259
        %v261 = vsel %vm239, %v238, -inf
        %262 = vmax.xlane.f32.xlu0 %v261
        %v263 = vpop.xlane.xlu0 %262
        %v264 = vsub.f32 %v231, %v242
        %v265 = vsub.f32 %v232, %v245
        %v266 = vsub.f32 %v233, %v248
        %v267 = vsub.f32 %v234, %v251
        %v268 = vsub.f32 %v235, %v254
        %v269 = vsub.f32 %v236, %v257
        %v270 = vsub.f32 %v237, %v260
        %v271 = vsub.f32 %v238, %v263
        %v272 = vmul.f32 %v264, 1.442695
        %v273 = vpow.pop %v272
        %v274 = vmul.f32 %v265, 1.442695
        %v275 = vpow.pop %v274
        %v276 = vmul.f32 %v266, 1.442695
        %v277 = vpow.pop %v276
        %v278 = vmul.f32 %v267, 1.442695
        %v279 = vpow.pop %v278
        %v280 = vmul.f32 %v268, 1.442695
        %v281 = vpow.pop %v280
        %v282 = vmul.f32 %v269, 1.442695
        %v283 = vpow.pop %v282
        %v284 = vmul.f32 %v270, 1.442695
        %v285 = vpow.pop %v284
        %v286 = vmul.f32 %v271, 1.442695
        %v287 = vpow.pop %v286
        %v288 = vsel %vm239, %v273, 0.0
        %289 = vadd.xlane.f32.xlu0 %v288
        %v290 = vpop.xlane.xlu0 %289
        %v291 = vsel %vm239, %v275, 0.0
        %292 = vadd.xlane.f32.xlu0 %v291
        %v293 = vpop.xlane.xlu0 %292
        %v294 = vsel %vm239, %v277, 0.0
        %295 = vadd.xlane.f32.xlu0 %v294
        %v296 = vpop.xlane.xlu0 %295
        %v297 = vsel %vm239, %v279, 0.0
        %298 = vadd.xlane.f32.xlu0 %v297
        %v299 = vpop.xlane.xlu0 %298
        %v300 = vsel %vm239, %v281, 0.0
        %301 = vadd.xlane.f32.xlu0 %v300
        %v302 = vpop.xlane.xlu0 %301
        %v303 = vsel %vm239, %v283, 0.0
        %304 = vadd.xlane.f32.xlu0 %v303
        %v305 = vpop.xlane.xlu0 %304
        %v306 = vsel %vm239, %v285, 0.0
        %307 = vadd.xlane.f32.xlu0 %v306
        %v308 = vpop.xlane.xlu0 %307
        %v309 = vsel %vm239, %v287, 0.0
        %310 = vadd.xlane.f32.xlu0 %v309
        %v311 = vpop.xlane.xlu0 %310
        %v312 = vrcp.pop %v290
        %v313 = vmul.f32 %v290, %v312
        %v314 = vsub.f32 1.0, %v313
        %v315 = vmul.f32 %v312, %v314
        %v316 = vadd.f32 %v312, %v315
        %vm317 = vweird.f32 %v290
        %vm318 = vweird.f32 %v312
        %vm319 = vmor %vm317, %vm318
        %v320 = vsel %vm319, %v312, %v316
        %v321 = vand.u32 2147483647, %v290
        %vm322 = vcmp.eq.f32.partialorder %v321, 8.507059e+37
        %v323 = vand.u32 %v290, 2147483648
        %v324 = vor.u32 1.1754944e-38, %v323
        %v325 = vsel %vm322, %v324, %v320
        %v326 = vrcp.pop %v293
        %v327 = vmul.f32 %v293, %v326
        %v328 = vsub.f32 1.0, %v327
        %v329 = vmul.f32 %v326, %v328
        %v330 = vadd.f32 %v326, %v329
        %vm331 = vweird.f32 %v293
        %vm332 = vweird.f32 %v326
        %vm333 = vmor %vm331, %vm332
        %v334 = vsel %vm333, %v326, %v330
        %v335 = vand.u32 2147483647, %v293
        %vm336 = vcmp.eq.f32.partialorder %v335, 8.507059e+37
        %v337 = vand.u32 %v293, 2147483648
        %v338 = vor.u32 1.1754944e-38, %v337
        %v339 = vsel %vm336, %v338, %v334
        %v340 = vrcp.pop %v296
        %v341 = vmul.f32 %v296, %v340
        %v342 = vsub.f32 1.0, %v341
        %v343 = vmul.f32 %v340, %v342
        %v344 = vadd.f32 %v340, %v343
        %vm345 = vweird.f32 %v296
        %vm346 = vweird.f32 %v340
        %vm347 = vmor %vm345, %vm346
        %v348 = vsel %vm347, %v340, %v344
        %v349 = vand.u32 2147483647, %v296
        %vm350 = vcmp.eq.f32.partialorder %v349, 8.507059e+37
        %v351 = vand.u32 %v296, 2147483648
        %v352 = vor.u32 1.1754944e-38, %v351
        %v353 = vsel %vm350, %v352, %v348
        %v354 = vrcp.pop %v299
        %v355 = vmul.f32 %v299, %v354
        %v356 = vsub.f32 1.0, %v355
        %v357 = vmul.f32 %v354, %v356
        %v358 = vadd.f32 %v354, %v357
        %vm359 = vweird.f32 %v299
        %vm360 = vweird.f32 %v354
        %vm361 = vmor %vm359, %vm360
        %v362 = vsel %vm361, %v354, %v358
        %v363 = vand.u32 2147483647, %v299
        %vm364 = vcmp.eq.f32.partialorder %v363, 8.507059e+37
        %v365 = vand.u32 %v299, 2147483648
        %v366 = vor.u32 1.1754944e-38, %v365
        %v367 = vsel %vm364, %v366, %v362
        %v368 = vrcp.pop %v302
        %v369 = vmul.f32 %v302, %v368
        %v370 = vsub.f32 1.0, %v369
        %v371 = vmul.f32 %v368, %v370
        %v372 = vadd.f32 %v368, %v371
        %vm373 = vweird.f32 %v302
        %vm374 = vweird.f32 %v368
        %vm375 = vmor %vm373, %vm374
        %v376 = vsel %vm375, %v368, %v372
        %v377 = vand.u32 2147483647, %v302
        %vm378 = vcmp.eq.f32.partialorder %v377, 8.507059e+37
        %v379 = vand.u32 %v302, 2147483648
        %v380 = vor.u32 1.1754944e-38, %v379
        %v381 = vsel %vm378, %v380, %v376
        %v382 = vrcp.pop %v305
        %v383 = vmul.f32 %v305, %v382
        %v384 = vsub.f32 1.0, %v383
        %v385 = vmul.f32 %v382, %v384
        %v386 = vadd.f32 %v382, %v385
        %vm387 = vweird.f32 %v305
        %vm388 = vweird.f32 %v382
        %vm389 = vmor %vm387, %vm388
        %v390 = vsel %vm389, %v382, %v386
        %v391 = vand.u32 2147483647, %v305
        %vm392 = vcmp.eq.f32.partialorder %v391, 8.507059e+37
        %v393 = vand.u32 %v305, 2147483648
        %v394 = vor.u32 1.1754944e-38, %v393
        %v395 = vsel %vm392, %v394, %v390
        %v396 = vrcp.pop %v308
        %v397 = vmul.f32 %v308, %v396
        %v398 = vsub.f32 1.0, %v397
        %v399 = vmul.f32 %v396, %v398
        %v400 = vadd.f32 %v396, %v399
        %vm401 = vweird.f32 %v308
        %vm402 = vweird.f32 %v396
        %vm403 = vmor %vm401, %vm402
        %v404 = vsel %vm403, %v396, %v400
        %v405 = vand.u32 2147483647, %v308
        %vm406 = vcmp.eq.f32.partialorder %v405, 8.507059e+37
        %v407 = vand.u32 %v308, 2147483648
        %v408 = vor.u32 1.1754944e-38, %v407
        %v409 = vsel %vm406, %v408, %v404
        %v410 = vrcp.pop %v311
        %v411 = vmul.f32 %v311, %v410
        %v412 = vsub.f32 1.0, %v411
        %v413 = vmul.f32 %v410, %v412
        %v414 = vadd.f32 %v410, %v413
        %vm415 = vweird.f32 %v311
        %vm416 = vweird.f32 %v410
        %vm417 = vmor %vm415, %vm416
        %v418 = vsel %vm417, %v410, %v414
        %v419 = vand.u32 2147483647, %v311
        %vm420 = vcmp.eq.f32.partialorder %v419, 8.507059e+37
        %v421 = vand.u32 %v311, 2147483648
        %v422 = vor.u32 1.1754944e-38, %v421
        %v423 = vsel %vm420, %v422, %v418
        %v424 = vmul.f32 %v273, %v325
        %v425 = vmul.f32 %v275, %v339
        %v426 = vmul.f32 %v277, %v353
        %v427 = vmul.f32 %v279, %v367
        %v428 = vmul.f32 %v281, %v381
        %v429 = vmul.f32 %v283, %v395
        %v430 = vmul.f32 %v285, %v409
        %v431 = vmul.f32 %v287, %v423
        %v432 = vld [vmem:[%s209] sm:$0xff]
        %v433 = vld [vmem:[%s209 + $0x8] sm:$0xff]
        %v434 = vld [vmem:[%s2] sm:$0xff]
        %vm435 = vcmask 261120
        %v437 = vsel %vm435, %v432, 0
        %439 = vmatpush.msra.mxu0 0.0
        %440 = vmatpush.msra.mxu0 0.0
        %441 = vmatpush.msra.mxu0 0.0
        %442 = vmatpush.msra.mxu0 0.0
        %443 = vmatpush.msra.mxu0 0.0
        %444 = vmatpush.msra.mxu0 0.0
        %445 = vmatpush.msra.mxu0 0.0
        %446 = vmatpush.msra.mxu0 0.0
        %447 = vmatpush.msra.mxu0 0.0
        %448 = vmatpush.msra.mxu0 0.0
        %449 = vmatpush.msra.mxu0 0.0
        %450 = vmatpush.msra.mxu0 0.0
        %451 = vmatpush.msra.mxu0 %v427
        %452 = vmatpush.msra.mxu0 %v426
        %453 = vmatpush.msra.mxu0 %v425
        %454 = vmatpush.msra.mxu0 %v424
        %455 = vmatmul.f32.gmra.mxu0 %v437
        %v456 = vpop.f32.mrf.mxu0
        %v457 = vadd.f32 0.0, %v456
        %458 = vdwg.mxu0
        %v460 = vsel %vm435, %v433, 0
        %462 = vmatpush.msra.mxu0 0.0
        %463 = vmatpush.msra.mxu0 0.0
        %464 = vmatpush.msra.mxu0 0.0
        %465 = vmatpush.msra.mxu0 0.0
        %466 = vmatpush.msra.mxu0 0.0
        %467 = vmatpush.msra.mxu0 0.0
        %468 = vmatpush.msra.mxu0 0.0
        %469 = vmatpush.msra.mxu0 0.0
        %470 = vmatpush.msra.mxu0 0.0
        %471 = vmatpush.msra.mxu0 0.0
        %472 = vmatpush.msra.mxu0 0.0
        %473 = vmatpush.msra.mxu0 0.0
        %474 = vmatpush.msra.mxu0 %v431
        %475 = vmatpush.msra.mxu0 %v430
        %476 = vmatpush.msra.mxu0 %v429
        %477 = vmatpush.msra.mxu0 %v428
        %478 = vmatmul.f32.gmra.mxu0 %v460
        %v479 = vpop.f32.mrf.mxu0
        %v480 = vadd.f32 0.0, %v479
        %481 = vdwg.mxu0
        %v482 = vld [vmem:[%s3] sm:$0x1]
        %v484 = vperm.slane %v482, 0
        %v487 = vsel %vm239, %v457, 0
        %489 = vmatpush.msra.mxu0 0.0
        %490 = vmatpush.msra.mxu0 0.0
        %491 = vmatpush.msra.mxu0 0.0
        %492 = vmatpush.msra.mxu0 0.0
        %493 = vmatpush.msra.mxu0 0.0
        %494 = vmatpush.msra.mxu0 0.0
        %495 = vmatpush.msra.mxu0 0.0
        %496 = vmatpush.msra.mxu0 0.0
        %497 = vmatpush.msra.mxu0 0.0
        %498 = vmatpush.msra.mxu0 0.0
        %499 = vmatpush.msra.mxu0 0.0
        %500 = vmatpush.msra.mxu0 0.0
        %501 = vmatpush.msra.mxu0 0.0
        %502 = vmatpush.msra.mxu0 0.0
        %503 = vmatpush.msra.mxu0 0.0
        %504 = vmatpush.msra.mxu0 %v434
        %505 = vmatmul.f32.gmra.mxu0 %v487
        %v506 = vpop.f32.mrf.mxu0
        %v507 = vadd.f32 %v484, %v506
        %508 = vdwg.mxu0
        %v510 = vsel %vm239, %v480, 0
        %512 = vmatpush.msra.mxu0 0.0
        %513 = vmatpush.msra.mxu0 0.0
        %514 = vmatpush.msra.mxu0 0.0
        %515 = vmatpush.msra.mxu0 0.0
        %516 = vmatpush.msra.mxu0 0.0
        %517 = vmatpush.msra.mxu0 0.0
        %518 = vmatpush.msra.mxu0 0.0
        %519 = vmatpush.msra.mxu0 0.0
        %520 = vmatpush.msra.mxu0 0.0
        %521 = vmatpush.msra.mxu0 0.0
        %522 = vmatpush.msra.mxu0 0.0
        %523 = vmatpush.msra.mxu0 0.0
        %524 = vmatpush.msra.mxu0 0.0
        %525 = vmatpush.msra.mxu0 0.0
        %526 = vmatpush.msra.mxu0 0.0
        %527 = vmatpush.msra.mxu0 %v434
        %528 = vmatmul.f32.gmra.mxu0 %v510
        %v529 = vpop.f32.mrf.mxu0
        %v530 = vadd.f32 %v484, %v529
        %531 = vdwg.mxu0
        %532 = vst.msk [vmem:[%s230] sm:$0xff] %vm239, %v507
        %533 = vst.msk [vmem:[%s230 + $0x8] sm:$0xff] %vm239, %v530
        %s534 = sand.u32 %s112, 1
        %s535 = sand.u32 %s112, 1
        %s536 = smul.addr %s535, 16
        %s537 = scalar_lea.vmem [#allocation3], %s536
        // Predicated region
        $region75: #{tpu_custom_call.1} parent=69 // pred_check
          %p538 = pneg %p122
        $region76: #{tpu_custom_call.1} parent=69 // pred_check_branch
          %540 = sbr.rel (%p538) target = $region78
        $region77: #{tpu_custom_call.1} parent=69 // pred_region
          %s541 = smul.addr %s15, 8
          %s542 = scalar_lea.vmem %s4, %s541
          // Predicated region
          $region79: #{tpu_custom_call.1} parent=77 // pred_check
            _
          $region80: #{tpu_custom_call.1} parent=77 // pred_check_branch
            %544 = sbr.rel (0) target = $region82
          $region81: #{tpu_custom_call.1} parent=77 // pred_region
            // Predicated region
            $region83: #{tpu_custom_call.1} parent=81 // pred_check
              _
            $region84: #{tpu_custom_call.1} parent=81 // pred_check_branch
              %546 = sbr.rel (0) target = $region86
            $region85: #{tpu_custom_call.1} parent=81 // pred_region
              // Predicated region
              $region98: #{tpu_custom_call.1} parent=85 // pred_check
                _
              $region99: #{tpu_custom_call.1} parent=85 // pred_check_branch
                %564 = sbr.rel (0) target = $region101
              $region100: #{tpu_custom_call.1} parent=85 // pred_region
                loop: start=0, step=1, limit=1
                $region102: #{tpu_custom_call.1} parent=100 // loop_pre_header
                  _
                $region103: #{tpu_custom_call.1} parent=100 // loop_header
                  %s566 = sphi 0, %s570
                  %p567 = scmp.ge.s32.totalorder %s566, 1
                  %s571 = sphi %s537, %s537
                  %s572 = sphi %s542, %s542
                $region104: #{tpu_custom_call.1} parent=100 // loop_header_branch
                  %569 = sbr.rel (%p567) target = $region108
                $region105: #{tpu_custom_call.1} parent=100 // loop_body
                  %v573 = vld [vmem:[%s571] sm:$0xff]
                  %574 = vst [vmem:[%s572] sm:$0xff] %v573
                  %v575 = vld [vmem:[%s571 + $0x8] sm:$0xff]
                  %576 = vst [vmem:[%s572 + $0x10] sm:$0xff] %v575
                $region106: #{tpu_custom_call.1} parent=100 // loop_footer
                  %s570 = sadd.s32 1, %s566
                $region107: #{tpu_custom_call.1} parent=100 // loop_footer_branch
                  %565 = sbr.rel target = $region103
                $region108: #{tpu_custom_call.1} parent=100 // loop_exit
                  _
              $region101: #{tpu_custom_call.1} parent=85 // pred_fallthru
                _
              // Predicated region
              $region109: #{tpu_custom_call.1} parent=85 // pred_check
                _
              $region110: #{tpu_custom_call.1} parent=85 // pred_check_branch
                %578 = sbr.rel target = $region112
              $region111: #{tpu_custom_call.1} parent=85 // pred_region
                _
              $region112: #{tpu_custom_call.1} parent=85 // pred_fallthru
                _
            $region86: #{tpu_custom_call.1} parent=81 // pred_fallthru
              _
            // Predicated region
            $region87: #{tpu_custom_call.1} parent=81 // pred_check
              _
            $region88: #{tpu_custom_call.1} parent=81 // pred_check_branch
              %548 = sbr.rel target = $region90
            $region89: #{tpu_custom_call.1} parent=81 // pred_region
              %s550 = ssub.s32 256, 1
              loop: start=0, step=1, limit=1
              $region91: #{tpu_custom_call.1} parent=89 // loop_pre_header
                _
              $region92: #{tpu_custom_call.1} parent=89 // loop_header
                %s552 = sphi 0, %s556
                %p553 = scmp.ge.s32.totalorder %s552, 1
                %s557 = sphi %s537, %s537
                %s558 = sphi %s542, %s542
              $region93: #{tpu_custom_call.1} parent=89 // loop_header_branch
                %555 = sbr.rel (%p553) target = $region97
              $region94: #{tpu_custom_call.1} parent=89 // loop_body
                %v559 = vld [vmem:[%s557] sm:%s550]
                %560 = vst [vmem:[%s558] sm:%s550] %v559
                %v561 = vld [vmem:[%s557 + $0x8] sm:%s550]
                %562 = vst [vmem:[%s558 + $0x10] sm:%s550] %v561
              $region95: #{tpu_custom_call.1} parent=89 // loop_footer
                %s556 = sadd.s32 1, %s552
              $region96: #{tpu_custom_call.1} parent=89 // loop_footer_branch
                %551 = sbr.rel target = $region92
              $region97: #{tpu_custom_call.1} parent=89 // loop_exit
                _
            $region90: #{tpu_custom_call.1} parent=81 // pred_fallthru
              _
          $region82: #{tpu_custom_call.1} parent=77 // pred_fallthru
            _
          %579 = vnop
        $region78: #{tpu_custom_call.1} parent=69 // pred_fallthru
          _
      $region70: #{tpu_custom_call.1} parent=5 // pred_fallthru
        _
      %p580 = scmp.le.s32.totalorder 2, %s10
      // Predicated region
      $region113: #{tpu_custom_call.1} parent=5 // pred_check
        %p581 = pneg %p580
      $region114: #{tpu_custom_call.1} parent=5 // pred_check_branch
        %583 = sbr.rel (%p581) target = $region116
      $region115: #{tpu_custom_call.1} parent=5 // pred_region
        %s584 = ssub.s32 %s10, 2
        // Predicated region
        $region117: #{tpu_custom_call.1} parent=115 // pred_check
          %p585 = pneg %p128
        $region118: #{tpu_custom_call.1} parent=115 // pred_check_branch
          %587 = sbr.rel (%p585) target = $region120
        $region119: #{tpu_custom_call.1} parent=115 // pred_region
          %s588 = sand.u32 %s113, 1
          %s589 = sand.u32 %s113, 1
          %s590 = smul.addr %s589, 16
          %s591 = scalar_lea.vmem [#allocation3], %s590
        $region120: #{tpu_custom_call.1} parent=115 // pred_fallthru
          _
      $region116: #{tpu_custom_call.1} parent=5 // pred_fallthru
        _
    $region6: #{tpu_custom_call.1} parent=1 // loop_footer
      %s14 = sadd.s32 1, %s10
    $region7: #{tpu_custom_call.1} parent=1 // loop_footer_branch
      %9 = sbr.rel target = $region3
    $region8: #{tpu_custom_call.1} parent=1 // loop_exit
      _

</llo_original>
